<compile_context>
chip_gen: v6e
topology: v6e:2x2x1
jax: 0.10.0
libtpu: 0.0.40
codegen_flags: <defaults>
</compile_context>

<pallas_src>
import jax
import jax.numpy as jnp
from jax.experimental import pallas as pl
from jax.experimental.pallas import tpu as pltpu


# ----------------------------------------------------------------------------
# Fused kernel: pre-LN + FFN(SiLU) + 0.5*residual + final_linear + log_softmax
# ----------------------------------------------------------------------------
def fused_conformer_head_kernel(
    x_ref, g_ref, beta_ref, w1_ref, b1_ref, w2_ref, b2_ref, wf_ref, bf_ref, o_ref
):
    x = x_ref[...]                                              # (tt, D) f32

    # --- pre-LayerNorm (f32 elementwise path) ---
    mean = jnp.mean(x, axis=-1, keepdims=True)
    xc = x - mean
    var = jnp.mean(xc * xc, axis=-1, keepdims=True)
    xn = xc * jax.lax.rsqrt(var + 1e-5)
    xn = xn * g_ref[...] + beta_ref[...]                        # (tt, D)

    # --- FFN: bf16 operands on the MXU, f32 accumulation ---
    h = jnp.dot(xn.astype(jnp.bfloat16), w1_ref[...],
                preferred_element_type=jnp.float32) + b1_ref[...]   # (tt, H)
    h = h * jax.nn.sigmoid(h)                                   # SiLU in f32
    y = jnp.dot(h.astype(jnp.bfloat16), w2_ref[...],
                preferred_element_type=jnp.float32) + b2_ref[...]   # (tt, D)
    enc = x + 0.5 * y                                           # half-residual

    # --- final_linear + log_softmax(dim=-1), still on the resident tile ---
    logits = jnp.dot(enc.astype(jnp.bfloat16), wf_ref[...],
                     preferred_element_type=jnp.float32) + bf_ref[...]  # (tt, V)
    m = jnp.max(logits, axis=-1, keepdims=True)
    z = logits - m
    lse = jnp.log(jnp.sum(jnp.exp(z), axis=-1, keepdims=True))
    o_ref[...] = z - lse                                        # log_softmax


def conformer_ctc_head(x, params, *, tt=None):
    """x: (B, T, D) f32 -> log_probs: (B, T, V) f32."""
    B, T, D = x.shape
    H = params["w1"].shape[1]
    V = params["wf"].shape[1]

    if tt is None:
        tt = min(T, 128)                      # multiple of 8; fills MXU M on v5e
    assert T % tt == 0 and tt % 8 == 0
    assert D % 128 == 0 and H % 128 == 0 and V % 128 == 0, "lane-dense dims required"

    grid = (B, T // tt)

    # Advisory cost hint for XLA's scheduler around the custom call.
    flops = 2 * B * T * D * (2 * H + V)
    transcendentals = B * T * (H + V)                      # sigmoid + exp
    bytes_accessed = (
        4 * B * T * D                                      # x in (f32)
        + 4 * B * T * V                                    # log_probs out (f32)
        + 2 * (D * H + H * D + D * V)                      # bf16 weights
        + 4 * (2 * D + H + V)                              # f32 ln/bias vectors
    )
    cost = pl.CostEstimate(
        flops=flops, transcendentals=transcendentals, bytes_accessed=bytes_accessed
    )

    return pl.pallas_call(
        fused_conformer_head_kernel,
        out_shape=jax.ShapeDtypeStruct((B, T, V), jnp.float32),
        grid=grid,
        in_specs=[
            pl.BlockSpec((None, tt, D), lambda b, t: (b, t, 0)),   # x tile
            pl.BlockSpec((1, D), lambda b, t: (0, 0)),             # ln gamma
            pl.BlockSpec((1, D), lambda b, t: (0, 0)),             # ln beta
            pl.BlockSpec((D, H), lambda b, t: (0, 0)),             # w1 (bf16)
            pl.BlockSpec((1, H), lambda b, t: (0, 0)),             # b1
            pl.BlockSpec((H, D), lambda b, t: (0, 0)),             # w2 (bf16)
            pl.BlockSpec((1, D), lambda b, t: (0, 0)),             # b2
            pl.BlockSpec((D, V), lambda b, t: (0, 0)),             # wf (bf16)
            pl.BlockSpec((1, V), lambda b, t: (0, 0)),             # bf
        ],
        out_specs=pl.BlockSpec((None, tt, V), lambda b, t: (b, t, 0)),
        compiler_params=pltpu.CompilerParams(
            dimension_semantics=("parallel", "parallel"),
            vmem_limit_bytes=32 * 1024 * 1024,
        ),
        cost_estimate=cost,
    )(
        x,
        params["ln_g"], params["ln_b"],
        params["w1"], params["b1"],
        params["w2"], params["b2"],
        params["wf"], params["bf"],
    )


# ----------------------------------------------------------------------------
# Parameters (weights stored bf16 for MXU + halved HBM traffic; biases f32)
# ----------------------------------------------------------------------------
def init_params(key, dim, ffn_dim, target_size):
    k1, k2, k3 = jax.random.split(key, 3)
    s_in = 1.0 / jnp.sqrt(dim)
    s_h = 1.0 / jnp.sqrt(ffn_dim)
    return {
        "ln_g": jnp.ones((1, dim), jnp.float32),
        "ln_b": jnp.zeros((1, dim), jnp.float32),
        "w1": jax.random.uniform(k1, (dim, ffn_dim), jnp.float32, -s_in, s_in).astype(jnp.bfloat16),
        "b1": jnp.zeros((1, ffn_dim), jnp.float32),
        "w2": jax.random.uniform(k2, (ffn_dim, dim), jnp.float32, -s_h, s_h).astype(jnp.bfloat16),
        "b2": jnp.zeros((1, dim), jnp.float32),
        # torch.nn.Linear(dim, target_size) default init: U(-1/sqrt(dim), 1/sqrt(dim))
        "wf": jax.random.uniform(k3, (dim, target_size), jnp.float32, -s_in, s_in).astype(jnp.bfloat16),
        "bf": jnp.zeros((1, target_size), jnp.float32),
    }


# ----------------------------------------------------------------------------
# Model wrapper (glue in plain JAX)
# ----------------------------------------------------------------------------
def conformer_ctc_forward(params, audio_features, audio_features_len):
    # with torch.no_grad():
    x = jnp.squeeze(audio_features, axis=-1)                    # (B, T, D)
    # feature_extraction: identity passthrough of features & lengths  # TODO(synk)
    input_len = audio_features_len
    B, T, D = x.shape
    # specaugment: identity at inference (no_grad)
    # TODO(synk): full Conformer block (MHSA, depthwise-conv) comes from an
    #             unspecified ModuleFactoryV1; only the FFN hot path is fused here.

    # conformer FFN + dropout(eval=identity) + final_linear + log_softmax, fused.
    log_probs = conformer_ctc_head(x, params)

    # torch.sum(lengths_to_padding_mask(input_len), dim=1).type(torch.int32)
    # == clip(input_len, 0, T) — no kernel needed.
    out_len = jnp.clip(input_len, 0, T).astype(jnp.int32)
    return log_probs, out_len


# ----------------------------------------------------------------------------
# Pure-JAX reference (same bf16 matmul operands) for correctness check
# ----------------------------------------------------------------------------
def reference_forward(params, audio_features, audio_features_len):
    x = jnp.squeeze(audio_features, axis=-1).astype(jnp.float32)
    T = x.shape[1]
    mean = x.mean(-1, keepdims=True)
    var = ((x - mean) ** 2).mean(-1, keepdims=True)
    xn = (x - mean) * jax.lax.rsqrt(var + 1e-5) * params["ln_g"] + params["ln_b"]
    h = jnp.dot(xn.astype(jnp.bfloat16), params["w1"],
                preferred_element_type=jnp.float32) + params["b1"]
    h = h * jax.nn.sigmoid(h)
    y = jnp.dot(h.astype(jnp.bfloat16), params["w2"],
                preferred_element_type=jnp.float32) + params["b2"]
    enc = x + 0.5 * y
    logits = jnp.dot(enc.astype(jnp.bfloat16), params["wf"],
                     preferred_element_type=jnp.float32) + params["bf"]
    log_probs = jax.nn.log_softmax(logits, axis=-1)
    out_len = jnp.clip(audio_features_len, 0, T).astype(jnp.int32)
    return log_probs, out_len


if __name__ == "__main__":
    # Small but lane-dense shapes: D, H, V multiples of 128; tt multiple of 8.
    B, T, D, H, V = 2, 32, 128, 256, 128  # batch, time, dim, ffn_dim, target_size

    key = jax.random.PRNGKey(0)
    k_x, k_p = jax.random.split(key)
    audio_features = jax.random.normal(k_x, (B, T, D, 1), dtype=jnp.float32)
    audio_features_len = jnp.array([T, T - 5], dtype=jnp.int32)

    params = init_params(k_p, D, H, V)

    log_probs, out_len = conformer_ctc_forward(params, audio_features, audio_features_len)
    log_probs, out_len = jax.block_until_ready((log_probs, out_len))

    assert log_probs.shape == (B, T, V)
    assert log_probs.dtype == jnp.float32
    assert out_len.shape == (B,)
    assert out_len.dtype == jnp.int32

    # log_softmax rows must exponentiate-sum to 1
    row_sums = jnp.exp(log_probs).sum(axis=-1)
    assert jnp.allclose(row_sums, 1.0, atol=1e-4)
    assert int(out_len[0]) == T and int(out_len[1]) == T - 5

    # numerical parity with a pure-JAX reference of the same computation
    ref_lp, ref_len = reference_forward(params, audio_features, audio_features_len)
    assert jnp.allclose(log_probs, ref_lp, atol=5e-3, rtol=0)
    assert jnp.array_equal(out_len, ref_len)

    print("KERNEL_OK")
</pallas_src>

<mosaic_0001>
module attributes {stable_mosaic.version = 11 : i64} {
  func.func @fused_conformer_head_kernel(%arg0: i32, %arg1: i32, %arg2: memref<1x32x128xf32, #tpu.memory_space<vmem>>, %arg3: memref<1x128xf32, #tpu.memory_space<vmem>>, %arg4: memref<1x128xf32, #tpu.memory_space<vmem>>, %arg5: memref<128x256xbf16, #tpu.memory_space<vmem>>, %arg6: memref<1x256xf32, #tpu.memory_space<vmem>>, %arg7: memref<256x128xbf16, #tpu.memory_space<vmem>>, %arg8: memref<1x128xf32, #tpu.memory_space<vmem>>, %arg9: memref<128x128xbf16, #tpu.memory_space<vmem>>, %arg10: memref<1x128xf32, #tpu.memory_space<vmem>>, %arg11: memref<1x32x128xf32, #tpu.memory_space<vmem>>) attributes {dimension_semantics = [#tpu.dimension_semantics<parallel>, #tpu.dimension_semantics<parallel>], iteration_bounds = array<i64: 2, 1>, scalar_prefetch = 0 : i64, scratch_operands = 0 : i64, tpu.core_type = #tpu.core_type<tc>, window_params = [{transform_indices = @transform_0, window_bounds = array<i64: 1, 32, 128>}, {pipeline_mode = #tpu.pipeline_mode<synchronous>, transform_indices = @transform_1, window_bounds = array<i64: 1, 128>}, {pipeline_mode = #tpu.pipeline_mode<synchronous>, transform_indices = @transform_2, window_bounds = array<i64: 1, 128>}, {pipeline_mode = #tpu.pipeline_mode<synchronous>, transform_indices = @transform_3, window_bounds = array<i64: 128, 256>}, {pipeline_mode = #tpu.pipeline_mode<synchronous>, transform_indices = @transform_4, window_bounds = array<i64: 1, 256>}, {pipeline_mode = #tpu.pipeline_mode<synchronous>, transform_indices = @transform_5, window_bounds = array<i64: 256, 128>}, {pipeline_mode = #tpu.pipeline_mode<synchronous>, transform_indices = @transform_6, window_bounds = array<i64: 1, 128>}, {pipeline_mode = #tpu.pipeline_mode<synchronous>, transform_indices = @transform_7, window_bounds = array<i64: 128, 128>}, {pipeline_mode = #tpu.pipeline_mode<synchronous>, transform_indices = @transform_8, window_bounds = array<i64: 1, 128>}, {transform_indices = @transform_9, window_bounds = array<i64: 1, 32, 128>}]} {
    %c0 = arith.constant 0 : index
    %c0_0 = arith.constant 0 : index
    %c0_1 = arith.constant 0 : index
    %0 = vector.load %arg2[%c0, %c0_0, %c0_1] : memref<1x32x128xf32, #tpu.memory_space<vmem>>, vector<1x32x128xf32>
    %1 = vector.shape_cast %0 : vector<1x32x128xf32> to vector<32x128xf32>
    %cst = arith.constant dense<0.000000e+00> : vector<32xf32>
    %2 = vector.multi_reduction <add>, %1, %cst [1] : vector<32x128xf32> to vector<32xf32>
    %3 = vector.shape_cast %2 : vector<32xf32> to vector<32x1xf32>
    %cst_2 = arith.constant 1.280000e+02 : f32
    %4 = vector.broadcast %cst_2 : f32 to vector<32x1xf32>
    %5 = arith.divf %3, %4 : vector<32x1xf32>
    %6 = vector.broadcast %5 : vector<32x1xf32> to vector<32x128xf32>
    %7 = arith.subf %1, %6 : vector<32x128xf32>
    %8 = arith.mulf %7, %7 : vector<32x128xf32>
    %cst_3 = arith.constant dense<0.000000e+00> : vector<32xf32>
    %9 = vector.multi_reduction <add>, %8, %cst_3 [1] : vector<32x128xf32> to vector<32xf32>
    %10 = vector.shape_cast %9 : vector<32xf32> to vector<32x1xf32>
    %cst_4 = arith.constant 1.280000e+02 : f32
    %11 = vector.broadcast %cst_4 : f32 to vector<32x1xf32>
    %12 = arith.divf %10, %11 : vector<32x1xf32>
    %cst_5 = arith.constant 9.99999974E-6 : f32
    %13 = vector.broadcast %cst_5 : f32 to vector<32x1xf32>
    %14 = arith.addf %12, %13 : vector<32x1xf32>
    %15 = math.rsqrt %14 : vector<32x1xf32>
    %16 = vector.broadcast %15 : vector<32x1xf32> to vector<32x128xf32>
    %17 = arith.mulf %7, %16 : vector<32x128xf32>
    %c0_6 = arith.constant 0 : index
    %c0_7 = arith.constant 0 : index
    %18 = vector.load %arg3[%c0_6, %c0_7] : memref<1x128xf32, #tpu.memory_space<vmem>>, vector<1x128xf32>
    %19 = vector.broadcast %18 : vector<1x128xf32> to vector<32x128xf32>
    %20 = arith.mulf %17, %19 : vector<32x128xf32>
    %c0_8 = arith.constant 0 : index
    %c0_9 = arith.constant 0 : index
    %21 = vector.load %arg4[%c0_8, %c0_9] : memref<1x128xf32, #tpu.memory_space<vmem>>, vector<1x128xf32>
    %22 = vector.broadcast %21 : vector<1x128xf32> to vector<32x128xf32>
    %23 = arith.addf %20, %22 : vector<32x128xf32>
    %24 = arith.truncf %23 : vector<32x128xf32> to vector<32x128xbf16>
    %c0_10 = arith.constant 0 : index
    %c0_11 = arith.constant 0 : index
    %25 = vector.load %arg5[%c0_10, %c0_11] : memref<128x256xbf16, #tpu.memory_space<vmem>>, vector<128x256xbf16>
    %cst_12 = arith.constant dense<0.000000e+00> : vector<32x256xf32>
    %26 = tpu.matmul %24, %25, %cst_12 {dimension_numbers = #tpu.dot_dimension_numbers<[1], [0], [0], [1], [0, 0, 1, 1], [], []>} : vector<32x128xbf16>, vector<128x256xbf16>, vector<32x256xf32> -> vector<32x256xf32>
    %c0_13 = arith.constant 0 : index
    %c0_14 = arith.constant 0 : index
    %27 = vector.load %arg6[%c0_13, %c0_14] : memref<1x256xf32, #tpu.memory_space<vmem>>, vector<1x256xf32>
    %28 = vector.broadcast %27 : vector<1x256xf32> to vector<32x256xf32>
    %29 = arith.addf %26, %28 : vector<32x256xf32>
    %30 = arith.negf %29 : vector<32x256xf32>
    %31 = math.exp %30 : vector<32x256xf32>
    %cst_15 = arith.constant 1.000000e+00 : f32
    %32 = vector.broadcast %cst_15 : f32 to vector<32x256xf32>
    %33 = arith.addf %32, %31 : vector<32x256xf32>
    %34 = arith.divf %32, %33 : vector<32x256xf32>
    %35 = arith.mulf %29, %34 : vector<32x256xf32>
    %36 = arith.truncf %35 : vector<32x256xf32> to vector<32x256xbf16>
    %c0_16 = arith.constant 0 : index
    %c0_17 = arith.constant 0 : index
    %37 = vector.load %arg7[%c0_16, %c0_17] : memref<256x128xbf16, #tpu.memory_space<vmem>>, vector<256x128xbf16>
    %cst_18 = arith.constant dense<0.000000e+00> : vector<32x128xf32>
    %38 = tpu.matmul %36, %37, %cst_18 {dimension_numbers = #tpu.dot_dimension_numbers<[1], [0], [0], [1], [0, 0, 1, 1], [], []>} : vector<32x256xbf16>, vector<256x128xbf16>, vector<32x128xf32> -> vector<32x128xf32>
    %c0_19 = arith.constant 0 : index
    %c0_20 = arith.constant 0 : index
    %39 = vector.load %arg8[%c0_19, %c0_20] : memref<1x128xf32, #tpu.memory_space<vmem>>, vector<1x128xf32>
    %40 = vector.broadcast %39 : vector<1x128xf32> to vector<32x128xf32>
    %41 = arith.addf %38, %40 : vector<32x128xf32>
    %cst_21 = arith.constant 5.000000e-01 : f32
    %42 = vector.broadcast %cst_21 : f32 to vector<32x128xf32>
    %43 = arith.mulf %42, %41 : vector<32x128xf32>
    %44 = arith.addf %1, %43 : vector<32x128xf32>
    %45 = arith.truncf %44 : vector<32x128xf32> to vector<32x128xbf16>
    %c0_22 = arith.constant 0 : index
    %c0_23 = arith.constant 0 : index
    %46 = vector.load %arg9[%c0_22, %c0_23] : memref<128x128xbf16, #tpu.memory_space<vmem>>, vector<128x128xbf16>
    %cst_24 = arith.constant dense<0.000000e+00> : vector<32x128xf32>
    %47 = tpu.matmul %45, %46, %cst_24 {dimension_numbers = #tpu.dot_dimension_numbers<[1], [0], [0], [1], [0, 0, 1, 1], [], []>} : vector<32x128xbf16>, vector<128x128xbf16>, vector<32x128xf32> -> vector<32x128xf32>
    %c0_25 = arith.constant 0 : index
    %c0_26 = arith.constant 0 : index
    %48 = vector.load %arg10[%c0_25, %c0_26] : memref<1x128xf32, #tpu.memory_space<vmem>>, vector<1x128xf32>
    %49 = vector.broadcast %48 : vector<1x128xf32> to vector<32x128xf32>
    %50 = arith.addf %47, %49 : vector<32x128xf32>
    %cst_27 = arith.constant dense<0xFF800000> : vector<32xf32>
    %51 = vector.multi_reduction <maximumf>, %50, %cst_27 [1] : vector<32x128xf32> to vector<32xf32>
    %52 = vector.shape_cast %51 : vector<32xf32> to vector<32x1xf32>
    %53 = vector.broadcast %52 : vector<32x1xf32> to vector<32x128xf32>
    %54 = arith.subf %50, %53 : vector<32x128xf32>
    %55 = math.exp %54 : vector<32x128xf32>
    %cst_28 = arith.constant dense<0.000000e+00> : vector<32xf32>
    %56 = vector.multi_reduction <add>, %55, %cst_28 [1] : vector<32x128xf32> to vector<32xf32>
    %57 = vector.shape_cast %56 : vector<32xf32> to vector<32x1xf32>
    %58 = math.log %57 : vector<32x1xf32>
    %59 = vector.broadcast %58 : vector<32x1xf32> to vector<32x128xf32>
    %60 = arith.subf %54, %59 : vector<32x128xf32>
    %c0_29 = arith.constant 0 : index
    %c0_30 = arith.constant 0 : index
    %c0_31 = arith.constant 0 : index
    %61 = vector.load %arg11[%c0_29, %c0_30, %c0_31] : memref<1x32x128xf32, #tpu.memory_space<vmem>>, vector<1x32x128xf32>
    %62 = vector.shape_cast %61 : vector<1x32x128xf32> to vector<32x128xf32>
    %63 = vector.shape_cast %60 : vector<32x128xf32> to vector<1x32x128xf32>
    tpu.vector_store %arg11[%c0_29, %c0_30, %c0_31], %63 {strides = array<i32>} : memref<1x32x128xf32, #tpu.memory_space<vmem>>, vector<1x32x128xf32>,
    return
  }
  func.func @transform_0(%arg0: i32, %arg1: i32) -> (i32, i32, i32) {
    %c0_i32 = arith.constant 0 : i32
    %c0_i32_0 = arith.constant 0 : i32
    return %arg0, %arg1, %c0_i32 : i32, i32, i32
  }
  func.func @transform_1(%arg0: i32, %arg1: i32) -> (i32, i32) {
    %c0_i32 = arith.constant 0 : i32
    %c0_i32_0 = arith.constant 0 : i32
    %c0_i32_1 = arith.constant 0 : i32
    return %c0_i32, %c0_i32_0 : i32, i32
  }
  func.func @transform_2(%arg0: i32, %arg1: i32) -> (i32, i32) {
    %c0_i32 = arith.constant 0 : i32
    %c0_i32_0 = arith.constant 0 : i32
    %c0_i32_1 = arith.constant 0 : i32
    return %c0_i32, %c0_i32_0 : i32, i32
  }
  func.func @transform_3(%arg0: i32, %arg1: i32) -> (i32, i32) {
    %c0_i32 = arith.constant 0 : i32
    %c0_i32_0 = arith.constant 0 : i32
    %c0_i32_1 = arith.constant 0 : i32
    return %c0_i32, %c0_i32_0 : i32, i32
  }
  func.func @transform_4(%arg0: i32, %arg1: i32) -> (i32, i32) {
    %c0_i32 = arith.constant 0 : i32
    %c0_i32_0 = arith.constant 0 : i32
    %c0_i32_1 = arith.constant 0 : i32
    return %c0_i32, %c0_i32_0 : i32, i32
  }
  func.func @transform_5(%arg0: i32, %arg1: i32) -> (i32, i32) {
    %c0_i32 = arith.constant 0 : i32
    %c0_i32_0 = arith.constant 0 : i32
    %c0_i32_1 = arith.constant 0 : i32
    return %c0_i32, %c0_i32_0 : i32, i32
  }
  func.func @transform_6(%arg0: i32, %arg1: i32) -> (i32, i32) {
    %c0_i32 = arith.constant 0 : i32
    %c0_i32_0 = arith.constant 0 : i32
    %c0_i32_1 = arith.constant 0 : i32
    return %c0_i32, %c0_i32_0 : i32, i32
  }
  func.func @transform_7(%arg0: i32, %arg1: i32) -> (i32, i32) {
    %c0_i32 = arith.constant 0 : i32
    %c0_i32_0 = arith.constant 0 : i32
    %c0_i32_1 = arith.constant 0 : i32
    return %c0_i32, %c0_i32_0 : i32, i32
  }
  func.func @transform_8(%arg0: i32, %arg1: i32) -> (i32, i32) {
    %c0_i32 = arith.constant 0 : i32
    %c0_i32_0 = arith.constant 0 : i32
    %c0_i32_1 = arith.constant 0 : i32
    return %c0_i32, %c0_i32_0 : i32, i32
  }
  func.func @transform_9(%arg0: i32, %arg1: i32) -> (i32, i32, i32) {
    %c0_i32 = arith.constant 0 : i32
    %c0_i32_0 = arith.constant 0 : i32
    return %arg0, %arg1, %c0_i32 : i32, i32, i32
  }
}

</mosaic_0001>

<llo_original>
// kernel: tpu_custom_call.1
$region0: #{tpu_custom_call.1}
  #allocation0 [shape = 'u32[]', space=smem, size = 0x4, offset = 0x4, fixed_abs, tag = 'smem constant byte address 0x4 - core index']
  #allocation1 [shape = 'u32[144,128]{1,0:T(1,128)}', space=vmem, size = 0x12000, scoped, tag = 'internal scratch']
  %s0 = inlined_call_operand.hbm [shape: f32[2,32,128], index: 0, kind: input, shape index: {}]
  %s1 = inlined_call_operand.vmem [shape: f32[1,128], index: 1, kind: input, shape index: {}]
  %s2 = inlined_call_operand.hbm [shape: f32[1,128], index: 2, kind: input, shape index: {}]
  %s3 = inlined_call_operand.hbm [shape: bf16[128,256], index: 3, kind: input, shape index: {}]
  %s4 = inlined_call_operand.vmem [shape: f32[1,256], index: 4, kind: input, shape index: {}]
  %s5 = inlined_call_operand.hbm [shape: bf16[256,128], index: 5, kind: input, shape index: {}]
  %s6 = inlined_call_operand.vmem [shape: f32[1,128], index: 6, kind: input, shape index: {}]
  %s7 = inlined_call_operand.hbm [shape: bf16[128,128], index: 7, kind: input, shape index: {}]
  %s8 = inlined_call_operand.vmem [shape: f32[1,128], index: 8, kind: input, shape index: {}]
  %s9 = inlined_call_operand.hbm [shape: f32[2,32,128], index: 9, kind: output, shape index: {}]
  %s10 = sld [smem:[#allocation0]]
  $region89: #{tpu_custom_call.1} parent=0
    _
  %s12 = ssub.s32 1, %s10
  %s13 = scalar_select 0, %s12, %s10
  $region1: #{tpu_custom_call.1} parent=0
    #allocation2 [shape = 'u8[32768]{0}', space=vmem, size = 0x8000, scoped, tag = 'input window, operand 0']
    #allocation3 [shape = 's32[2]{0}', space=sflag, size = 0x8, scoped, tag = 'scoped memory for tpu_custom_call.1']
    #allocation4 [shape = 's32[2]{0}', space=sflag, size = 0x8, scoped, tag = 'scoped memory for tpu_custom_call.1']
    #allocation5 [shape = 'u8[512]{0}', space=vmem, size = 0x400, scoped, tag = 'input window, operand 2, single buffered']
    #allocation6 [shape = 's32[1]{0}', space=sflag, size = 0x4, scoped, tag = 'scoped memory for tpu_custom_call.1']
    #allocation7 [shape = 'u8[65536]{0}', space=vmem, size = 0x10000, scoped, tag = 'input window, operand 3, single buffered']
    #allocation8 [shape = 'u8[65536]{0}', space=vmem, size = 0x10000, scoped, tag = 'input window, operand 5, single buffered']
    #allocation9 [shape = 's32[1]{0}', space=sflag, size = 0x4, scoped, tag = 'scoped memory for tpu_custom_call.1']
    #allocation10 [shape = 'u8[32768]{0}', space=vmem, size = 0x8000, scoped, tag = 'input window, operand 7, single buffered']
    #allocation11 [shape = 'u8[32768]{0}', space=vmem, size = 0x8000, scoped, tag = 'output window, operand 0']
    %14 = vsyncpa [#allocation3], 0
    %s15 = scalar_lea.sflag [#allocation3], 1
    %16 = vsyncpa %s15, 0
    %17 = vsyncpa [#allocation6], 0
    %18 = vsyncpa [#allocation9], 0
    %19 = vsyncpa [#allocation4], 0
    %s20 = scalar_lea.sflag [#allocation4], 1
    %21 = vsyncpa %s20, 0
    loop: start=0, step=1, limit=4
    $region2: #{tpu_custom_call.1} parent=1 // loop_pre_header
      _
    $region3: #{tpu_custom_call.1} parent=1 // loop_header
      %s23 = sphi 0, %s27
      %p24 = scmp.ge.s32.totalorder %s23, 4
      %s30 = sphi 0, %s42
      %s31 = sphi 0, %s38
      %s32 = sphi 0, %s30
      %s33 = sphi 0, %s31
      %s34 = sphi 0, %s32
      %s35 = sphi 0, %s33
      %s47 = sphi 0, %s49
      %s50 = sphi 0, %s47
      %s51 = sphi 0, %s50
      %s67 = sphi 0, %s51
      %s71 = sphi 0, %s71
      %s73 = sphi 0, %s71
      %s74 = sphi 0, %s73
      %s88 = sphi 0, %s74
      %s92 = sphi 0, %s92
      %s94 = sphi 0, %s92
      %s95 = sphi 0, %s94
      %s109 = sphi 0, %s95
      %s113 = sphi 0, %s113
      %s115 = sphi 0, %s113
      %s116 = sphi 0, %s115
      %s130 = sphi 0, %s116
      %s134 = sphi 0, %s134
      %s136 = sphi 0, %s134
      %s137 = sphi 0, %s136
      %s151 = sphi 0, %s137
      %s155 = sphi 0, %s155
      %s157 = sphi 0, %s155
      %s158 = sphi 0, %s157
      %s172 = sphi 0, %s158
      %s176 = sphi 0, %s176
      %s178 = sphi 0, %s176
      %s179 = sphi 0, %s178
      %s193 = sphi 0, %s179
      %s197 = sphi 0, %s197
      %s199 = sphi 0, %s197
      %s200 = sphi 0, %s199
      %s214 = sphi 0, %s200
      %s218 = sphi 0, %s218
      %s220 = sphi 0, %s218
      %s221 = sphi 0, %s220
      %s235 = sphi 0, %s221
      %s243 = sphi 0, %s245
      %s246 = sphi 0, %s243
      %s247 = sphi 0, %s246
      %s263 = sphi 0, %s247
    $region4: #{tpu_custom_call.1} parent=1 // loop_header_branch
      %26 = sbr.rel (%p24) target = $region8
    $region5: #{tpu_custom_call.1} parent=1 // loop_body
      %s28 = ssub.s32 %s23, 1
      %s29 = ssub.s32 %s23, 2
      %s36 = sadd.s32 1, %s31
      %p37 = scmp.ge.s32.totalorder %s36, 1
      %s38 = scalar_select %p37, 0, %s36
      %s39 = sadd.s32 1, %s30
      %s40 = scalar_select %p37, %s39, %s30
      %p41 = scmp.ge.s32.totalorder %s40, 2
      %s42 = scalar_select %p41, 0, %s40
      %s43 = ssub.s32 %s30, %s42
      %s44 = ssub.s32 %s31, %s38
      %s45 = sor.u32 %s43, %s44
      %p46 = scmp.eq.s32.totalorder %s45, 0
      %s48 = sadd.s32 %s47, 1
      %s49 = scalar_select %p46, %s47, %s48
      %p52 = pneg %p46
      %p53 = scmp.eq.s32.totalorder %s23, 1
      %p54 = por %p52, %p53
      %p55 = scmp.ne.s32.totalorder %s47, %s50
      %p56 = scmp.eq.s32.totalorder %s23, 0
      %p57 = por %p55, %p56
      %p58 = scmp.ne.s32.totalorder %s47, %s50
      %p59 = scmp.eq.s32.totalorder %s28, 1
      %p60 = por %p58, %p59
      %p61 = scmp.ne.s32.totalorder %s50, %s51
      %p62 = scmp.eq.s32.totalorder %s28, 0
      %p63 = por %p61, %p62
      %p64 = scmp.ne.s32.totalorder %s50, %s51
      %p65 = scmp.eq.s32.totalorder %s29, 1
      %p66 = por %p64, %p65
      %p68 = scmp.ne.s32.totalorder %s51, %s67
      %p69 = scmp.eq.s32.totalorder %s29, 0
      %p70 = por %p68, %p69
      %s72 = sadd.s32 %s71, 1
      %p75 = scmp.eq.s32.totalorder %s23, 1
      %p76 = scmp.ne.s32.totalorder %s71, %s73
      %p77 = scmp.eq.s32.totalorder %s23, 0
      %p78 = por %p76, %p77
      %p79 = scmp.ne.s32.totalorder %s71, %s73
      %p80 = scmp.eq.s32.totalorder %s28, 1
      %p81 = por %p79, %p80
      %p82 = scmp.ne.s32.totalorder %s73, %s74
      %p83 = scmp.eq.s32.totalorder %s28, 0
      %p84 = por %p82, %p83
      %p85 = scmp.ne.s32.totalorder %s73, %s74
      %p86 = scmp.eq.s32.totalorder %s29, 1
      %p87 = por %p85, %p86
      %p89 = scmp.ne.s32.totalorder %s74, %s88
      %p90 = scmp.eq.s32.totalorder %s29, 0
      %p91 = por %p89, %p90
      %s93 = sadd.s32 %s92, 1
      %p96 = scmp.eq.s32.totalorder %s23, 1
      %p97 = scmp.ne.s32.totalorder %s92, %s94
      %p98 = scmp.eq.s32.totalorder %s23, 0
      %p99 = por %p97, %p98
      %p100 = scmp.ne.s32.totalorder %s92, %s94
      %p101 = scmp.eq.s32.totalorder %s28, 1
      %p102 = por %p100, %p101
      %p103 = scmp.ne.s32.totalorder %s94, %s95
      %p104 = scmp.eq.s32.totalorder %s28, 0
      %p105 = por %p103, %p104
      %p106 = scmp.ne.s32.totalorder %s94, %s95
      %p107 = scmp.eq.s32.totalorder %s29, 1
      %p108 = por %p106, %p107
      %p110 = scmp.ne.s32.totalorder %s95, %s109
      %p111 = scmp.eq.s32.totalorder %s29, 0
      %p112 = por %p110, %p111
      %s114 = sadd.s32 %s113, 1
      %p117 = scmp.eq.s32.totalorder %s23, 1
      %p118 = scmp.ne.s32.totalorder %s113, %s115
      %p119 = scmp.eq.s32.totalorder %s23, 0
      %p120 = por %p118, %p119
      %p121 = scmp.ne.s32.totalorder %s113, %s115
      %p122 = scmp.eq.s32.totalorder %s28, 1
      %p123 = por %p121, %p122
      %p124 = scmp.ne.s32.totalorder %s115, %s116
      %p125 = scmp.eq.s32.totalorder %s28, 0
      %p126 = por %p124, %p125
      %p127 = scmp.ne.s32.totalorder %s115, %s116
      %p128 = scmp.eq.s32.totalorder %s29, 1
      %p129 = por %p127, %p128
      %p131 = scmp.ne.s32.totalorder %s116, %s130
      %p132 = scmp.eq.s32.totalorder %s29, 0
      %p133 = por %p131, %p132
      %s135 = sadd.s32 %s134, 1
      %p138 = scmp.eq.s32.totalorder %s23, 1
      %p139 = scmp.ne.s32.totalorder %s134, %s136
      %p140 = scmp.eq.s32.totalorder %s23, 0
      %p141 = por %p139, %p140
      %p142 = scmp.ne.s32.totalorder %s134, %s136
      %p143 = scmp.eq.s32.totalorder %s28, 1
      %p144 = por %p142, %p143
      %p145 = scmp.ne.s32.totalorder %s136, %s137
      %p146 = scmp.eq.s32.totalorder %s28, 0
      %p147 = por %p145, %p146
      %p148 = scmp.ne.s32.totalorder %s136, %s137
      %p149 = scmp.eq.s32.totalorder %s29, 1
      %p150 = por %p148, %p149
      %p152 = scmp.ne.s32.totalorder %s137, %s151
      %p153 = scmp.eq.s32.totalorder %s29, 0
      %p154 = por %p152, %p153
      %s156 = sadd.s32 %s155, 1
      %p159 = scmp.eq.s32.totalorder %s23, 1
      %p160 = scmp.ne.s32.totalorder %s155, %s157
      %p161 = scmp.eq.s32.totalorder %s23, 0
      %p162 = por %p160, %p161
      %p163 = scmp.ne.s32.totalorder %s155, %s157
      %p164 = scmp.eq.s32.totalorder %s28, 1
      %p165 = por %p163, %p164
      %p166 = scmp.ne.s32.totalorder %s157, %s158
      %p167 = scmp.eq.s32.totalorder %s28, 0
      %p168 = por %p166, %p167
      %p169 = scmp.ne.s32.totalorder %s157, %s158
      %p170 = scmp.eq.s32.totalorder %s29, 1
      %p171 = por %p169, %p170
      %p173 = scmp.ne.s32.totalorder %s158, %s172
      %p174 = scmp.eq.s32.totalorder %s29, 0
      %p175 = por %p173, %p174
      %s177 = sadd.s32 %s176, 1
      %p180 = scmp.eq.s32.totalorder %s23, 1
      %p181 = scmp.ne.s32.totalorder %s176, %s178
      %p182 = scmp.eq.s32.totalorder %s23, 0
      %p183 = por %p181, %p182
      %p184 = scmp.ne.s32.totalorder %s176, %s178
      %p185 = scmp.eq.s32.totalorder %s28, 1
      %p186 = por %p184, %p185
      %p187 = scmp.ne.s32.totalorder %s178, %s179
      %p188 = scmp.eq.s32.totalorder %s28, 0
      %p189 = por %p187, %p188
      %p190 = scmp.ne.s32.totalorder %s178, %s179
      %p191 = scmp.eq.s32.totalorder %s29, 1
      %p192 = por %p190, %p191
      %p194 = scmp.ne.s32.totalorder %s179, %s193
      %p195 = scmp.eq.s32.totalorder %s29, 0
      %p196 = por %p194, %p195
      %s198 = sadd.s32 %s197, 1
      %p201 = scmp.eq.s32.totalorder %s23, 1
      %p202 = scmp.ne.s32.totalorder %s197, %s199
      %p203 = scmp.eq.s32.totalorder %s23, 0
      %p204 = por %p202, %p203
      %p205 = scmp.ne.s32.totalorder %s197, %s199
      %p206 = scmp.eq.s32.totalorder %s28, 1
      %p207 = por %p205, %p206
      %p208 = scmp.ne.s32.totalorder %s199, %s200
      %p209 = scmp.eq.s32.totalorder %s28, 0
      %p210 = por %p208, %p209
      %p211 = scmp.ne.s32.totalorder %s199, %s200
      %p212 = scmp.eq.s32.totalorder %s29, 1
      %p213 = por %p211, %p212
      %p215 = scmp.ne.s32.totalorder %s200, %s214
      %p216 = scmp.eq.s32.totalorder %s29, 0
      %p217 = por %p215, %p216
      %s219 = sadd.s32 %s218, 1
      %p222 = scmp.eq.s32.totalorder %s23, 1
      %p223 = scmp.ne.s32.totalorder %s218, %s220
      %p224 = scmp.eq.s32.totalorder %s23, 0
      %p225 = por %p223, %p224
      %p226 = scmp.ne.s32.totalorder %s218, %s220
      %p227 = scmp.eq.s32.totalorder %s28, 1
      %p228 = por %p226, %p227
      %p229 = scmp.ne.s32.totalorder %s220, %s221
      %p230 = scmp.eq.s32.totalorder %s28, 0
      %p231 = por %p229, %p230
      %p232 = scmp.ne.s32.totalorder %s220, %s221
      %p233 = scmp.eq.s32.totalorder %s29, 1
      %p234 = por %p232, %p233
      %p236 = scmp.ne.s32.totalorder %s221, %s235
      %p237 = scmp.eq.s32.totalorder %s29, 0
      %p238 = por %p236, %p237
      %s239 = ssub.s32 %s30, %s42
      %s240 = ssub.s32 %s31, %s38
      %s241 = sor.u32 %s239, %s240
      %p242 = scmp.eq.s32.totalorder %s241, 0
      %s244 = sadd.s32 %s243, 1
      %s245 = scalar_select %p242, %s243, %s244
      %p248 = pneg %p242
      %p249 = scmp.eq.s32.totalorder %s23, 1
      %p250 = por %p248, %p249
      %p251 = scmp.ne.s32.totalorder %s243, %s246
      %p252 = scmp.eq.s32.totalorder %s23, 0
      %p253 = por %p251, %p252
      %p254 = scmp.ne.s32.totalorder %s243, %s246
      %p255 = scmp.eq.s32.totalorder %s28, 1
      %p256 = por %p254, %p255
      %p257 = scmp.ne.s32.totalorder %s246, %s247
      %p258 = scmp.eq.s32.totalorder %s28, 0
      %p259 = por %p257, %p258
      %p260 = scmp.ne.s32.totalorder %s246, %s247
      %p261 = scmp.eq.s32.totalorder %s29, 1
      %p262 = por %p260, %p261
      %p264 = scmp.ne.s32.totalorder %s247, %s263
      %p265 = scmp.eq.s32.totalorder %s29, 0
      %p266 = por %p264, %p265
      %p267 = scmp.le.s32.totalorder 1, %s23
      %p268 = scmp.lt.s32.totalorder %s23, 3
      %p269 = pnand %p267, %p268
      %p270 = pneg %p269
      // Predicated region
      $region9: #{tpu_custom_call.1} parent=5 // pred_check
        _
      $region10: #{tpu_custom_call.1} parent=5 // pred_check_branch
        %272 = sbr.rel (%p269) target = $region12
      $region11: #{tpu_custom_call.1} parent=5 // pred_region
        %s273 = ssub.s32 %s23, 1
        // Predicated region
        $region13: #{tpu_custom_call.1} parent=11 // pred_check
          %p274 = pneg %p84
        $region14: #{tpu_custom_call.1} parent=11 // pred_check_branch
          %276 = sbr.rel (%p274) target = $region16
        $region15: #{tpu_custom_call.1} parent=11 // pred_region
          _
        $region16: #{tpu_custom_call.1} parent=11 // pred_fallthru
          _
        // Predicated region
        $region17: #{tpu_custom_call.1} parent=11 // pred_check
          %p277 = pneg %p105
        $region18: #{tpu_custom_call.1} parent=11 // pred_check_branch
          %279 = sbr.rel (%p277) target = $region20
        $region19: #{tpu_custom_call.1} parent=11 // pred_region
          %s281 = ssub.s32 16, 16
          %282 = vsyncadd [#allocation6], %s281
          %s284 = sshll.u32 [#allocation5], 4
          %s285 = int_to_ptr.vmem [resolvable:$true] %s284
          %287 = dma.hbm_to_vmem [thread:$0]  %s2, 16, %s285, [#allocation6]
        $region20: #{tpu_custom_call.1} parent=11 // pred_fallthru
          _
        // Predicated region
        $region21: #{tpu_custom_call.1} parent=11 // pred_check
          %p288 = pneg %p126
        $region22: #{tpu_custom_call.1} parent=11 // pred_check_branch
          %290 = sbr.rel (%p288) target = $region24
        $region23: #{tpu_custom_call.1} parent=11 // pred_region
          %s292 = ssub.s32 2048, 2048
          %293 = vsyncadd [#allocation6], %s292
          %s294 = sshll.u32 [#allocation7], 4
          %s295 = int_to_ptr.vmem [resolvable:$true] %s294
          %300 = dma.hbm_to_vmem [thread:$0]  %s3, 2048, %s295, [#allocation6], 128, 128, 8
        $region24: #{tpu_custom_call.1} parent=11 // pred_fallthru
          _
        // Predicated region
        $region25: #{tpu_custom_call.1} parent=11 // pred_check
          %p301 = pneg %p147
        $region26: #{tpu_custom_call.1} parent=11 // pred_check_branch
          %303 = sbr.rel (%p301) target = $region28
        $region27: #{tpu_custom_call.1} parent=11 // pred_region
          _
        $region28: #{tpu_custom_call.1} parent=11 // pred_fallthru
          _
        // Predicated region
        $region29: #{tpu_custom_call.1} parent=11 // pred_check
          %p304 = pneg %p168
        $region30: #{tpu_custom_call.1} parent=11 // pred_check_branch
          %306 = sbr.rel (%p304) target = $region32
        $region31: #{tpu_custom_call.1} parent=11 // pred_region
          %s308 = ssub.s32 2048, 2048
          %309 = vsyncadd [#allocation9], %s308
          %s310 = sshll.u32 [#allocation8], 4
          %s311 = int_to_ptr.vmem [resolvable:$true] %s310
          %316 = dma.hbm_to_vmem [thread:$0]  %s5, 2048, %s311, [#allocation9], 64, 64, 4
        $region32: #{tpu_custom_call.1} parent=11 // pred_fallthru
          _
        // Predicated region
        $region33: #{tpu_custom_call.1} parent=11 // pred_check
          %p317 = pneg %p189
        $region34: #{tpu_custom_call.1} parent=11 // pred_check_branch
          %319 = sbr.rel (%p317) target = $region36
        $region35: #{tpu_custom_call.1} parent=11 // pred_region
          _
        $region36: #{tpu_custom_call.1} parent=11 // pred_fallthru
          _
        // Predicated region
        $region37: #{tpu_custom_call.1} parent=11 // pred_check
          %p320 = pneg %p210
        $region38: #{tpu_custom_call.1} parent=11 // pred_check_branch
          %322 = sbr.rel (%p320) target = $region40
        $region39: #{tpu_custom_call.1} parent=11 // pred_region
          %s324 = ssub.s32 1024, 1024
          %325 = vsyncadd [#allocation9], %s324
          %s326 = sshll.u32 [#allocation10], 4
          %s327 = int_to_ptr.vmem [resolvable:$true] %s326
          %332 = dma.hbm_to_vmem [thread:$0]  %s7, 1024, %s327, [#allocation9], 64, 64, 4
        $region40: #{tpu_custom_call.1} parent=11 // pred_fallthru
          _
        // Predicated region
        $region41: #{tpu_custom_call.1} parent=11 // pred_check
          %p333 = pneg %p231
        $region42: #{tpu_custom_call.1} parent=11 // pred_check_branch
          %335 = sbr.rel (%p333) target = $region44
        $region43: #{tpu_custom_call.1} parent=11 // pred_region
          _
        $region44: #{tpu_custom_call.1} parent=11 // pred_fallthru
          _
      $region12: #{tpu_custom_call.1} parent=5 // pred_fallthru
        _
      %p336 = scmp.lt.s32.totalorder %s23, 2
      // Predicated region
      $region45: #{tpu_custom_call.1} parent=5 // pred_check
        %p337 = pneg %p336
      $region46: #{tpu_custom_call.1} parent=5 // pred_check_branch
        %339 = sbr.rel (%p337) target = $region48
      $region47: #{tpu_custom_call.1} parent=5 // pred_region
        // Predicated region
        $region49: #{tpu_custom_call.1} parent=47 // pred_check
          %p340 = pneg %p57
        $region50: #{tpu_custom_call.1} parent=47 // pred_check_branch
          %342 = sbr.rel (%p340) target = $region52
        $region51: #{tpu_custom_call.1} parent=47 // pred_region
          %s343 = sand.u32 %s47, 1
          %s344 = scalar_lea.sflag [#allocation3], %s343
          %s345 = sand.u32 %s47, 1
          %s346 = smul.addr %s345, 32
          %s347 = scalar_lea.vmem [#allocation2], %s346
          %s348 = smul.u32 4, %s31
          %s350 = ssub.s32 512, 512
          %351 = vsyncadd %s344, %s350
          %s352 = smul.addr %s30, 4
          %s353 = sadd.s32 %s348, %s352
          %s354 = smul.addr %s353, 128
          %s355 = scalar_lea.hbm %s0, %s354
          %s356 = sshll.u32 %s347, 4
          %s357 = int_to_ptr.vmem [resolvable:$true] %s356
          %362 = dma.hbm_to_vmem [thread:$0]  %s355, 512, %s357, %s344, 128, 128, 8
        $region52: #{tpu_custom_call.1} parent=47 // pred_fallthru
          _
      $region48: #{tpu_custom_call.1} parent=5 // pred_fallthru
        _
      %p363 = scmp.le.s32.totalorder 1, %s23
      %p364 = scmp.lt.s32.totalorder %s23, 3
      %p365 = pnand %p363, %p364
      %p366 = pneg %p365
      // Predicated region
      $region53: #{tpu_custom_call.1} parent=5 // pred_check
        _
      $region54: #{tpu_custom_call.1} parent=5 // pred_check_branch
        %368 = sbr.rel (%p365) target = $region56
      $region55: #{tpu_custom_call.1} parent=5 // pred_region
        %s369 = ssub.s32 %s23, 1
        %s370 = sand.u32 %s50, 1
        %s371 = scalar_lea.sflag [#allocation3], %s370
        %s372 = sand.u32 %s50, 1
        %s373 = smul.addr %s372, 32
        %s374 = scalar_lea.vmem [#allocation2], %s373
        // Predicated region
        $region57: #{tpu_custom_call.1} parent=55 // pred_check
          %p375 = pneg %p63
        $region58: #{tpu_custom_call.1} parent=55 // pred_check_branch
          %377 = sbr.rel (%p375) target = $region60
        $region59: #{tpu_custom_call.1} parent=55 // pred_region
          %378 = dma.done %s371, 512
        $region60: #{tpu_custom_call.1} parent=55 // pred_fallthru
          _
        // Predicated region
        $region61: #{tpu_custom_call.1} parent=55 // pred_check
          %p379 = pneg %p105
        $region62: #{tpu_custom_call.1} parent=55 // pred_check_branch
          %381 = sbr.rel (%p379) target = $region64
        $region63: #{tpu_custom_call.1} parent=55 // pred_region
          %382 = dma.done [#allocation6], 16
        $region64: #{tpu_custom_call.1} parent=55 // pred_fallthru
          _
        // Predicated region
        $region65: #{tpu_custom_call.1} parent=55 // pred_check
          %p383 = pneg %p126
        $region66: #{tpu_custom_call.1} parent=55 // pred_check_branch
          %385 = sbr.rel (%p383) target = $region68
        $region67: #{tpu_custom_call.1} parent=55 // pred_region
          %386 = dma.done [#allocation6], 2048
        $region68: #{tpu_custom_call.1} parent=55 // pred_fallthru
          _
        // Predicated region
        $region69: #{tpu_custom_call.1} parent=55 // pred_check
          %p387 = pneg %p168
        $region70: #{tpu_custom_call.1} parent=55 // pred_check_branch
          %389 = sbr.rel (%p387) target = $region72
        $region71: #{tpu_custom_call.1} parent=55 // pred_region
          %390 = dma.done [#allocation9], 2048
        $region72: #{tpu_custom_call.1} parent=55 // pred_fallthru
          _
        // Predicated region
        $region73: #{tpu_custom_call.1} parent=55 // pred_check
          %p391 = pneg %p210
        $region74: #{tpu_custom_call.1} parent=55 // pred_check_branch
          %393 = sbr.rel (%p391) target = $region76
        $region75: #{tpu_custom_call.1} parent=55 // pred_region
          %394 = dma.done [#allocation9], 1024
        $region76: #{tpu_custom_call.1} parent=55 // pred_fallthru
          _
        %s395 = sand.u32 %s50, 1
        %s396 = scalar_lea.sflag [#allocation3], %s395
        %s397 = sand.u32 %s50, 1
        %s398 = smul.addr %s397, 32
        %s399 = scalar_lea.vmem [#allocation2], %s398
        %p400 = pneg %p63
        %p401 = pneg %p60
        %p402 = pneg %p84
        %p403 = pneg %p81
        %p404 = pneg %p105
        %p405 = pneg %p102
        %p406 = pneg %p126
        %p407 = pneg %p123
        %p408 = pneg %p147
        %p409 = pneg %p144
        %p410 = pneg %p168
        %p411 = pneg %p165
        %p412 = pneg %p189
        %p413 = pneg %p186
        %p414 = pneg %p210
        %p415 = pneg %p207
        %p416 = pneg %p231
        %p417 = pneg %p228
        %p418 = pneg %p259
        %p419 = pneg %p256
        %s420 = sand.u32 %s246, 1
        %s421 = scalar_lea.sflag [#allocation4], %s420
        %s422 = sand.u32 %s246, 1
        %s423 = smul.addr %s422, 32
        %s424 = scalar_lea.vmem [#allocation11], %s423
        %s425 = smul.u32 4, %s33
        %s426 = smul.u32 4, %s33
        %v428 = vld [vmem:[%s374] sm:$0xff]
        %v429 = vld [vmem:[%s374 + $0x8] sm:$0xff]
        %v430 = vld [vmem:[%s374 + $0x10] sm:$0xff]
        %v431 = vld [vmem:[%s374 + $0x18] sm:$0xff]
        %432 = vadd.xlane.f32.xlu0 %v428
        %v433 = vpop.xlane.xlu0 %432
        %434 = vadd.xlane.f32.xlu0 %v429
        %v435 = vpop.xlane.xlu0 %434
        %436 = vadd.xlane.f32.xlu0 %v430
        %v437 = vpop.xlane.xlu0 %436
        %438 = vadd.xlane.f32.xlu0 %v431
        %v439 = vpop.xlane.xlu0 %438
        %v440 = vrcp.pop 128.0
        %v441 = vmul.f32 %v433, %v440
        %v442 = vmul.f32 %v435, %v440
        %v443 = vmul.f32 %v437, %v440
        %v444 = vmul.f32 %v439, %v440
        %v445 = vsub.f32 %v428, %v441
        %v446 = vsub.f32 %v429, %v442
        %v447 = vsub.f32 %v430, %v443
        %v448 = vsub.f32 %v431, %v444
        %v449 = vmul.f32 %v445, %v445
        %v450 = vmul.f32 %v446, %v446
        %v451 = vmul.f32 %v447, %v447
        %v452 = vmul.f32 %v448, %v448
        %453 = vadd.xlane.f32.xlu0 %v449
        %v454 = vpop.xlane.xlu0 %453
        %455 = vadd.xlane.f32.xlu0 %v450
        %v456 = vpop.xlane.xlu0 %455
        %457 = vadd.xlane.f32.xlu0 %v451
        %v458 = vpop.xlane.xlu0 %457
        %459 = vadd.xlane.f32.xlu0 %v452
        %v460 = vpop.xlane.xlu0 %459
        %v461 = vmul.f32 %v454, %v440
        %v462 = vmul.f32 %v456, %v440
        %v463 = vmul.f32 %v458, %v440
        %v464 = vmul.f32 %v460, %v440
        %v465 = vadd.f32 %v461, 1e-05
        %v466 = vadd.f32 %v462, 1e-05
        %v467 = vadd.f32 %v463, 1e-05
        %v468 = vadd.f32 %v464, 1e-05
        %v469 = vrsqrt.pop %v465
        %v470 = vrsqrt.pop %v466
        %v471 = vrsqrt.pop %v467
        %v472 = vrsqrt.pop %v468
        %v473 = vmul.f32 %v445, %v469
        %v474 = vmul.f32 %v446, %v470
        %v475 = vmul.f32 %v447, %v471
        %v476 = vmul.f32 %v448, %v472
        %v477 = vld [vmem:[%s1] sm:$0x1]
        %v479 = vlaneseq
        %v480 = vshrl.u32 %v479, 7
        %v481 = vsub.s32 0, %v480
        %v482 = vrot.slane %v477, %v481
        %v484 = vmul.f32 %v473, %v482
        %v485 = vmul.f32 %v474, %v482
        %v486 = vmul.f32 %v475, %v482
        %v487 = vmul.f32 %v476, %v482
        %v488 = vld [vmem:[#allocation5] sm:$0x1]
        %v490 = vlaneseq
        %v491 = vshrl.u32 %v490, 7
        %v492 = vsub.s32 0, %v491
        %v493 = vrot.slane %v488, %v492
        %v495 = vadd.f32 %v484, %v493
        %v496 = vadd.f32 %v485, %v493
        %v497 = vadd.f32 %v486, %v493
        %v498 = vadd.f32 %v487, %v493
        %v499 = vpack.c.bf16 %v496, %v495
        %v500 = vpack.c.bf16 %v498, %v497
        %v501 = vld [vmem:[#allocation7] sm:$0xff]
        %v502 = vld [vmem:[#allocation7 + $0x8] sm:$0xff]
        %v503 = vld [vmem:[#allocation7 + $0x10] sm:$0xff]
        %v504 = vld [vmem:[#allocation7 + $0x18] sm:$0xff]
        %v505 = vld [vmem:[#allocation7 + $0x20] sm:$0xff]
        %v506 = vld [vmem:[#allocation7 + $0x28] sm:$0xff]
        %v507 = vld [vmem:[#allocation7 + $0x30] sm:$0xff]
        %v508 = vld [vmem:[#allocation7 + $0x38] sm:$0xff]
        %v509 = vld [vmem:[#allocation7 + $0x40] sm:$0xff]
        %v510 = vld [vmem:[#allocation7 + $0x48] sm:$0xff]
        %v511 = vld [vmem:[#allocation7 + $0x50] sm:$0xff]
        %v512 = vld [vmem:[#allocation7 + $0x58] sm:$0xff]
        %v513 = vld [vmem:[#allocation7 + $0x60] sm:$0xff]
        %v514 = vld [vmem:[#allocation7 + $0x68] sm:$0xff]
        %v515 = vld [vmem:[#allocation7 + $0x70] sm:$0xff]
        %v516 = vld [vmem:[#allocation7 + $0x78] sm:$0xff]
        %v517 = vld [vmem:[%s4] sm:$0x3]
        %v519 = vlaneseq
        %v520 = vshrl.u32 %v519, 7
        %v521 = vsub.s32 0, %v520
        %v522 = vrot.slane %v517, %v521
        %v523 = vlaneseq
        %v524 = vshrl.u32 %v523, 7
        %v525 = vsub.s32 1, %v524
        %v526 = vrot.slane %v517, %v525
        %v545 = vunpack.c.l.b16 %v501
        %v546 = vunpack.c.h.b16 %v501
        %v547 = vunpack.c.l.b16 %v502
        %v548 = vunpack.c.h.b16 %v502
        %v549 = vunpack.c.l.b16 %v503
        %v550 = vunpack.c.h.b16 %v503
        %v551 = vunpack.c.l.b16 %v504
        %v552 = vunpack.c.h.b16 %v504
        %v553 = vunpack.c.l.b16 %v505
        %v554 = vunpack.c.h.b16 %v505
        %v555 = vunpack.c.l.b16 %v506
        %v556 = vunpack.c.h.b16 %v506
        %v557 = vunpack.c.l.b16 %v507
        %v558 = vunpack.c.h.b16 %v507
        %v559 = vunpack.c.l.b16 %v508
        %v560 = vunpack.c.h.b16 %v508
        %v561 = vunpack.c.l.b16 %v509
        %v562 = vunpack.c.h.b16 %v509
        %v563 = vunpack.c.l.b16 %v510
        %v564 = vunpack.c.h.b16 %v510
        %v565 = vunpack.c.l.b16 %v511
        %v566 = vunpack.c.h.b16 %v511
        %v567 = vunpack.c.l.b16 %v512
        %v568 = vunpack.c.h.b16 %v512
        %v569 = vunpack.c.l.b16 %v513
        %v570 = vunpack.c.h.b16 %v513
        %v571 = vunpack.c.l.b16 %v514
        %v572 = vunpack.c.h.b16 %v514
        %v573 = vunpack.c.l.b16 %v515
        %v574 = vunpack.c.h.b16 %v515
        %v575 = vunpack.c.l.b16 %v516
        %v576 = vunpack.c.h.b16 %v516
        %v577 = vpack.c.b16 %v547, %v545
        %v578 = vpack.c.b16 %v548, %v546
        %v579 = vpack.c.b16 %v551, %v549
        %v580 = vpack.c.b16 %v552, %v550
        %v581 = vpack.c.b16 %v555, %v553
        %v582 = vpack.c.b16 %v556, %v554
        %v583 = vpack.c.b16 %v559, %v557
        %v584 = vpack.c.b16 %v560, %v558
        %v585 = vpack.c.b16 %v563, %v561
        %v586 = vpack.c.b16 %v564, %v562
        %v587 = vpack.c.b16 %v567, %v565
        %v588 = vpack.c.b16 %v568, %v566
        %v589 = vpack.c.b16 %v571, %v569
        %v590 = vpack.c.b16 %v572, %v570
        %v591 = vpack.c.b16 %v575, %v573
        %v592 = vpack.c.b16 %v576, %v574
        %609 = vmatprep.subr.bf16.mxu0 %v592
        %610 = vmatpush1.bf16.msra.mxu0 %v591
        %611 = vmatprep.subr.bf16.mxu0 %v590
        %612 = vmatpush1.bf16.msra.mxu0 %v589
        %613 = vmatprep.subr.bf16.mxu0 %v588
        %614 = vmatpush1.bf16.msra.mxu0 %v587
        %615 = vmatprep.subr.bf16.mxu0 %v586
        %616 = vmatpush1.bf16.msra.mxu0 %v585
        %617 = vmatprep.subr.bf16.mxu0 %v584
        %618 = vmatpush1.bf16.msra.mxu0 %v583
        %619 = vmatprep.subr.bf16.mxu0 %v582
        %620 = vmatpush1.bf16.msra.mxu0 %v581
        %621 = vmatprep.subr.bf16.mxu0 %v580
        %622 = vmatpush1.bf16.msra.mxu0 %v579
        %623 = vmatprep.subr.bf16.mxu0 %v578
        %624 = vmatpush1.bf16.msra.mxu0 %v577
        %625 = vmatprep.subr.bf16.mxu0 0
        %626 = vmatpush2.bf16.msra.mxu0 0
        %627 = vmatprep.subr.bf16.mxu0 0
        %628 = vmatpush2.bf16.msra.mxu0 0
        %629 = vmatprep.subr.bf16.mxu0 0
        %630 = vmatpush2.bf16.msra.mxu0 0
        %631 = vmatprep.subr.bf16.mxu0 0
        %632 = vmatpush2.bf16.msra.mxu0 0
        %633 = vmatprep.subr.bf16.mxu0 0
        %634 = vmatpush2.bf16.msra.mxu0 0
        %635 = vmatprep.subr.bf16.mxu0 0
        %636 = vmatpush2.bf16.msra.mxu0 0
        %637 = vmatprep.subr.bf16.mxu0 0
        %638 = vmatpush2.bf16.msra.mxu0 0
        %639 = vmatprep.subr.bf16.mxu0 0
        %640 = vmatpush2.bf16.msra.mxu0 0
        %641 = vmatprep.mubr.bf16.mxu0 0
        %642 = vmatmul.mubr.bf16.gmra.mxu0 %v499
        %v643 = vpop.f32.mrf.mxu0
        %v644 = vadd.f32 %v522, %v643
        %v645 = vpop.f32.mrf.mxu0
        %v646 = vadd.f32 %v526, %v645
        %v647 = vpop.f32.mrf.mxu0
        %v648 = vadd.f32 %v522, %v647
        %v649 = vpop.f32.mrf.mxu0
        %v650 = vadd.f32 %v526, %v649
        %651 = vmatprep.mubr.bf16.mxu0 0
        %652 = vmatmul.mubr.bf16.gmra.mxu0 %v500
        %v653 = vpop.f32.mrf.mxu0
        %v654 = vadd.f32 %v522, %v653
        %v655 = vpop.f32.mrf.mxu0
        %v656 = vadd.f32 %v526, %v655
        %v657 = vpop.f32.mrf.mxu0
        %v658 = vadd.f32 %v522, %v657
        %v659 = vpop.f32.mrf.mxu0
        %v660 = vadd.f32 %v526, %v659
        %661 = vdwg.mxu0
        %v662 = vxor.u32 %v644, 2147483648
        %v663 = vxor.u32 %v646, 2147483648
        %v664 = vxor.u32 %v648, 2147483648
        %v665 = vxor.u32 %v650, 2147483648
        %v666 = vxor.u32 %v654, 2147483648
        %v667 = vxor.u32 %v656, 2147483648
        %v668 = vxor.u32 %v658, 2147483648
        %v669 = vxor.u32 %v660, 2147483648
        %v670 = vmul.f32 %v662, 1.442695
        %v671 = vpow.pop %v670
        %v672 = vmul.f32 %v663, 1.442695
        %v673 = vpow.pop %v672
        %v674 = vmul.f32 %v664, 1.442695
        %v675 = vpow.pop %v674
        %v676 = vmul.f32 %v665, 1.442695
        %v677 = vpow.pop %v676
        %v678 = vmul.f32 %v666, 1.442695
        %v679 = vpow.pop %v678
        %v680 = vmul.f32 %v667, 1.442695
        %v681 = vpow.pop %v680
        %v682 = vmul.f32 %v668, 1.442695
        %v683 = vpow.pop %v682
        %v684 = vmul.f32 %v669, 1.442695
        %v685 = vpow.pop %v684
        %v686 = vadd.f32 %v671, 1.0
        %v687 = vadd.f32 %v673, 1.0
        %v688 = vadd.f32 %v675, 1.0
        %v689 = vadd.f32 %v677, 1.0
        %v690 = vadd.f32 %v679, 1.0
        %v691 = vadd.f32 %v681, 1.0
        %v692 = vadd.f32 %v683, 1.0
        %v693 = vadd.f32 %v685, 1.0
        %v694 = vrcp.pop %v686
        %v695 = vmul.f32 1.0, %v694
        %v696 = vrcp.pop %v687
        %v697 = vmul.f32 1.0, %v696
        %v698 = vrcp.pop %v688
        %v699 = vmul.f32 1.0, %v698
        %v700 = vrcp.pop %v689
        %v701 = vmul.f32 1.0, %v700
        %v702 = vrcp.pop %v690
        %v703 = vmul.f32 1.0, %v702
        %v704 = vrcp.pop %v691
        %v705 = vmul.f32 1.0, %v704
        %v706 = vrcp.pop %v692
        %v707 = vmul.f32 1.0, %v706
        %v708 = vrcp.pop %v693
        %v709 = vmul.f32 1.0, %v708
        %v710 = vmul.f32 %v644, %v695
        %v711 = vmul.f32 %v646, %v697
        %v712 = vmul.f32 %v648, %v699
        %v713 = vmul.f32 %v650, %v701
        %v714 = vmul.f32 %v654, %v703
        %v715 = vmul.f32 %v656, %v705
        %v716 = vmul.f32 %v658, %v707
        %v717 = vmul.f32 %v660, %v709
        %v718 = vpack.c.bf16 %v712, %v710
        %v719 = vpack.c.bf16 %v713, %v711
        %v720 = vpack.c.bf16 %v716, %v714
        %v721 = vpack.c.bf16 %v717, %v715
        %v722 = vld [vmem:[#allocation8] sm:$0xf]
        %v723 = vld [vmem:[#allocation8 + $0x4] sm:$0xf]
        %v724 = vld [vmem:[#allocation8 + $0x8] sm:$0xf]
        %v725 = vld [vmem:[#allocation8 + $0xc] sm:$0xf]
        %v726 = vld [vmem:[#allocation8 + $0x10] sm:$0xf]
        %v727 = vld [vmem:[#allocation8 + $0x14] sm:$0xf]
        %v728 = vld [vmem:[#allocation8 + $0x18] sm:$0xf]
        %v729 = vld [vmem:[#allocation8 + $0x1c] sm:$0xf]
        %v730 = vld [vmem:[#allocation8 + $0x20] sm:$0xf]
        %v731 = vld [vmem:[#allocation8 + $0x24] sm:$0xf]
        %v732 = vld [vmem:[#allocation8 + $0x28] sm:$0xf]
        %v733 = vld [vmem:[#allocation8 + $0x2c] sm:$0xf]
        %v734 = vld [vmem:[#allocation8 + $0x30] sm:$0xf]
        %v735 = vld [vmem:[#allocation8 + $0x34] sm:$0xf]
        %v736 = vld [vmem:[#allocation8 + $0x38] sm:$0xf]
        %v737 = vld [vmem:[#allocation8 + $0x3c] sm:$0xf]
        %v738 = vld [vmem:[#allocation8 + $0x40] sm:$0xf]
        %v739 = vld [vmem:[#allocation8 + $0x44] sm:$0xf]
        %v740 = vld [vmem:[#allocation8 + $0x48] sm:$0xf]
        %v741 = vld [vmem:[#allocation8 + $0x4c] sm:$0xf]
        %v742 = vld [vmem:[#allocation8 + $0x50] sm:$0xf]
        %v743 = vld [vmem:[#allocation8 + $0x54] sm:$0xf]
        %v744 = vld [vmem:[#allocation8 + $0x58] sm:$0xf]
        %v745 = vld [vmem:[#allocation8 + $0x5c] sm:$0xf]
        %v746 = vld [vmem:[#allocation8 + $0x60] sm:$0xf]
        %v747 = vld [vmem:[#allocation8 + $0x64] sm:$0xf]
        %v748 = vld [vmem:[#allocation8 + $0x68] sm:$0xf]
        %v749 = vld [vmem:[#allocation8 + $0x6c] sm:$0xf]
        %v750 = vld [vmem:[#allocation8 + $0x70] sm:$0xf]
        %v751 = vld [vmem:[#allocation8 + $0x74] sm:$0xf]
        %v752 = vld [vmem:[#allocation8 + $0x78] sm:$0xf]
        %v753 = vld [vmem:[#allocation8 + $0x7c] sm:$0xf]
        %v754 = vld [vmem:[%s6] sm:$0x1]
        %v756 = vlaneseq
        %v757 = vshrl.u32 %v756, 7
        %v758 = vsub.s32 0, %v757
        %v759 = vrot.slane %v754, %v758
        %v793 = vunpack.c.l.b16 %v722
        %v794 = vunpack.c.l.b16 %v723
        %v795 = vunpack.c.l.b16 %v724
        %v796 = vunpack.c.l.b16 %v725
        %v797 = vunpack.c.l.b16 %v726
        %v798 = vunpack.c.l.b16 %v727
        %v799 = vunpack.c.l.b16 %v728
        %v800 = vunpack.c.l.b16 %v729
        %v801 = vunpack.c.l.b16 %v730
        %v802 = vunpack.c.l.b16 %v731
        %v803 = vunpack.c.l.b16 %v732
        %v804 = vunpack.c.l.b16 %v733
        %v805 = vunpack.c.l.b16 %v734
        %v806 = vunpack.c.l.b16 %v735
        %v807 = vunpack.c.l.b16 %v736
        %v808 = vunpack.c.l.b16 %v737
        %v809 = vunpack.c.l.b16 %v738
        %v810 = vunpack.c.l.b16 %v739
        %v811 = vunpack.c.l.b16 %v740
        %v812 = vunpack.c.l.b16 %v741
        %v813 = vunpack.c.l.b16 %v742
        %v814 = vunpack.c.l.b16 %v743
        %v815 = vunpack.c.l.b16 %v744
        %v816 = vunpack.c.l.b16 %v745
        %v817 = vunpack.c.l.b16 %v746
        %v818 = vunpack.c.l.b16 %v747
        %v819 = vunpack.c.l.b16 %v748
        %v820 = vunpack.c.l.b16 %v749
        %v821 = vunpack.c.l.b16 %v750
        %v822 = vunpack.c.l.b16 %v751
        %v823 = vunpack.c.l.b16 %v752
        %v824 = vunpack.c.l.b16 %v753
        %v825 = vpack.c.b16 %v794, %v793
        %v826 = vpack.c.b16 %v796, %v795
        %v827 = vpack.c.b16 %v798, %v797
        %v828 = vpack.c.b16 %v800, %v799
        %v829 = vpack.c.b16 %v802, %v801
        %v830 = vpack.c.b16 %v804, %v803
        %v831 = vpack.c.b16 %v806, %v805
        %v832 = vpack.c.b16 %v808, %v807
        %v833 = vpack.c.b16 %v810, %v809
        %v834 = vpack.c.b16 %v812, %v811
        %v835 = vpack.c.b16 %v814, %v813
        %v836 = vpack.c.b16 %v816, %v815
        %v837 = vpack.c.b16 %v818, %v817
        %v838 = vpack.c.b16 %v820, %v819
        %v839 = vpack.c.b16 %v822, %v821
        %v840 = vpack.c.b16 %v824, %v823
        %857 = vmatprep.subr.bf16.mxu0 0
        %858 = vmatpush1.bf16.msra.mxu0 %v832
        %859 = vmatprep.subr.bf16.mxu0 0
        %860 = vmatpush1.bf16.msra.mxu0 %v831
        %861 = vmatprep.subr.bf16.mxu0 0
        %862 = vmatpush1.bf16.msra.mxu0 %v830
        %863 = vmatprep.subr.bf16.mxu0 0
        %864 = vmatpush1.bf16.msra.mxu0 %v829
        %865 = vmatprep.subr.bf16.mxu0 0
        %866 = vmatpush1.bf16.msra.mxu0 %v828
        %867 = vmatprep.subr.bf16.mxu0 0
        %868 = vmatpush1.bf16.msra.mxu0 %v827
        %869 = vmatprep.subr.bf16.mxu0 0
        %870 = vmatpush1.bf16.msra.mxu0 %v826
        %871 = vmatprep.subr.bf16.mxu0 0
        %872 = vmatpush1.bf16.msra.mxu0 %v825
        %873 = vmatprep.subr.bf16.mxu0 0
        %874 = vmatpush2.bf16.msra.mxu0 %v840
        %875 = vmatprep.subr.bf16.mxu0 0
        %876 = vmatpush2.bf16.msra.mxu0 %v839
        %877 = vmatprep.subr.bf16.mxu0 0
        %878 = vmatpush2.bf16.msra.mxu0 %v838
        %879 = vmatprep.subr.bf16.mxu0 0
        %880 = vmatpush2.bf16.msra.mxu0 %v837
        %881 = vmatprep.subr.bf16.mxu0 0
        %882 = vmatpush2.bf16.msra.mxu0 %v836
        %883 = vmatprep.subr.bf16.mxu0 0
        %884 = vmatpush2.bf16.msra.mxu0 %v835
        %885 = vmatprep.subr.bf16.mxu0 0
        %886 = vmatpush2.bf16.msra.mxu0 %v834
        %887 = vmatprep.subr.bf16.mxu0 0
        %888 = vmatpush2.bf16.msra.mxu0 %v833
        %889 = vmatprep.mubr.bf16.mxu0 %v719
        %890 = vmatmul.mubr.bf16.gmra.mxu0 %v718
        %v891 = vpop.f32.mrf.mxu0
        %v892 = vadd.f32 %v759, %v891
        %v893 = vpop.f32.mrf.mxu0
        %v894 = vpop.f32.mrf.mxu0
        %v895 = vadd.f32 %v759, %v894
        %v896 = vpop.f32.mrf.mxu0
        %897 = vmatprep.mubr.bf16.mxu0 %v721
        %898 = vmatmul.mubr.bf16.gmra.mxu0 %v720
        %v899 = vpop.f32.mrf.mxu0
        %v900 = vadd.f32 %v759, %v899
        %v901 = vpop.f32.mrf.mxu0
        %v902 = vpop.f32.mrf.mxu0
        %v903 = vadd.f32 %v759, %v902
        %v904 = vpop.f32.mrf.mxu0
        %905 = vdwg.mxu0
        %v906 = vmul.f32 %v892, 0.5
        %v907 = vmul.f32 %v895, 0.5
        %v908 = vmul.f32 %v900, 0.5
        %v909 = vmul.f32 %v903, 0.5
        %v910 = vadd.f32 %v428, %v906
        %v911 = vadd.f32 %v429, %v907
        %v912 = vadd.f32 %v430, %v908
        %v913 = vadd.f32 %v431, %v909
        %v914 = vpack.c.bf16 %v911, %v910
        %v915 = vpack.c.bf16 %v913, %v912
        %v916 = vld [vmem:[#allocation10] sm:$0xf]
        %v917 = vld [vmem:[#allocation10 + $0x4] sm:$0xf]
        %v918 = vld [vmem:[#allocation10 + $0x8] sm:$0xf]
        %v919 = vld [vmem:[#allocation10 + $0xc] sm:$0xf]
        %v920 = vld [vmem:[#allocation10 + $0x10] sm:$0xf]
        %v921 = vld [vmem:[#allocation10 + $0x14] sm:$0xf]
        %v922 = vld [vmem:[#allocation10 + $0x18] sm:$0xf]
        %v923 = vld [vmem:[#allocation10 + $0x1c] sm:$0xf]
        %v924 = vld [vmem:[#allocation10 + $0x20] sm:$0xf]
        %v925 = vld [vmem:[#allocation10 + $0x24] sm:$0xf]
        %v926 = vld [vmem:[#allocation10 + $0x28] sm:$0xf]
        %v927 = vld [vmem:[#allocation10 + $0x2c] sm:$0xf]
        %v928 = vld [vmem:[#allocation10 + $0x30] sm:$0xf]
        %v929 = vld [vmem:[#allocation10 + $0x34] sm:$0xf]
        %v930 = vld [vmem:[#allocation10 + $0x38] sm:$0xf]
        %v931 = vld [vmem:[#allocation10 + $0x3c] sm:$0xf]
        %v932 = vld [vmem:[%s8] sm:$0x1]
        %v934 = vlaneseq
        %v935 = vshrl.u32 %v934, 7
        %v936 = vsub.s32 0, %v935
        %v937 = vrot.slane %v932, %v936
        %v955 = vunpack.c.l.b16 %v916
        %v956 = vunpack.c.l.b16 %v917
        %v957 = vunpack.c.l.b16 %v918
        %v958 = vunpack.c.l.b16 %v919
        %v959 = vunpack.c.l.b16 %v920
        %v960 = vunpack.c.l.b16 %v921
        %v961 = vunpack.c.l.b16 %v922
        %v962 = vunpack.c.l.b16 %v923
        %v963 = vunpack.c.l.b16 %v924
        %v964 = vunpack.c.l.b16 %v925
        %v965 = vunpack.c.l.b16 %v926
        %v966 = vunpack.c.l.b16 %v927
        %v967 = vunpack.c.l.b16 %v928
        %v968 = vunpack.c.l.b16 %v929
        %v969 = vunpack.c.l.b16 %v930
        %v970 = vunpack.c.l.b16 %v931
        %v971 = vpack.c.b16 %v956, %v955
        %v972 = vpack.c.b16 %v958, %v957
        %v973 = vpack.c.b16 %v960, %v959
        %v974 = vpack.c.b16 %v962, %v961
        %v975 = vpack.c.b16 %v964, %v963
        %v976 = vpack.c.b16 %v966, %v965
        %v977 = vpack.c.b16 %v968, %v967
        %v978 = vpack.c.b16 %v970, %v969
        %987 = vmatprep.subr.bf16.mxu0 0
        %988 = vmatpush1.bf16.msra.mxu0 %v978
        %989 = vmatprep.subr.bf16.mxu0 0
        %990 = vmatpush1.bf16.msra.mxu0 %v977
        %991 = vmatprep.subr.bf16.mxu0 0
        %992 = vmatpush1.bf16.msra.mxu0 %v976
        %993 = vmatprep.subr.bf16.mxu0 0
        %994 = vmatpush1.bf16.msra.mxu0 %v975
        %995 = vmatprep.subr.bf16.mxu0 0
        %996 = vmatpush1.bf16.msra.mxu0 %v974
        %997 = vmatprep.subr.bf16.mxu0 0
        %998 = vmatpush1.bf16.msra.mxu0 %v973
        %999 = vmatprep.subr.bf16.mxu0 0
        %1000 = vmatpush1.bf16.msra.mxu0 %v972
        %1001 = vmatprep.subr.bf16.mxu0 0
        %1002 = vmatpush1.bf16.msra.mxu0 %v971
        %1003 = vmatprep.subr.bf16.mxu0 0
        %1004 = vmatpush2.bf16.msra.mxu0 0
        %1005 = vmatprep.subr.bf16.mxu0 0
        %1006 = vmatpush2.bf16.msra.mxu0 0
        %1007 = vmatprep.subr.bf16.mxu0 0
        %1008 = vmatpush2.bf16.msra.mxu0 0
        %1009 = vmatprep.subr.bf16.mxu0 0
        %1010 = vmatpush2.bf16.msra.mxu0 0
        %1011 = vmatprep.subr.bf16.mxu0 0
        %1012 = vmatpush2.bf16.msra.mxu0 0
        %1013 = vmatprep.subr.bf16.mxu0 0
        %1014 = vmatpush2.bf16.msra.mxu0 0
        %1015 = vmatprep.subr.bf16.mxu0 0
        %1016 = vmatpush2.bf16.msra.mxu0 0
        %1017 = vmatprep.subr.bf16.mxu0 0
        %1018 = vmatpush2.bf16.msra.mxu0 0
        %1019 = vmatprep.mubr.bf16.mxu0 0
        %1020 = vmatmul.mubr.bf16.gmra.mxu0 %v914
        %v1021 = vpop.f32.mrf.mxu0
        %v1022 = vadd.f32 %v937, %v1021
        %v1023 = vpop.f32.mrf.mxu0
        %v1024 = vpop.f32.mrf.mxu0
        %v1025 = vadd.f32 %v937, %v1024
        %v1026 = vpop.f32.mrf.mxu0
        %1027 = vmatprep.mubr.bf16.mxu0 0
        %1028 = vmatmul.mubr.bf16.gmra.mxu0 %v915
        %v1029 = vpop.f32.mrf.mxu0
        %v1030 = vadd.f32 %v937, %v1029
        %v1031 = vpop.f32.mrf.mxu0
        %v1032 = vpop.f32.mrf.mxu0
        %v1033 = vadd.f32 %v937, %v1032
        %v1034 = vpop.f32.mrf.mxu0
        %1035 = vdwg.mxu0
        %1036 = vmax.xlane.f32.xlu0 %v1022
        %v1037 = vpop.xlane.xlu0 %1036
        %1038 = vmax.xlane.f32.xlu0 %v1025
        %v1039 = vpop.xlane.xlu0 %1038
        %1040 = vmax.xlane.f32.xlu0 %v1030
        %v1041 = vpop.xlane.xlu0 %1040
        %1042 = vmax.xlane.f32.xlu0 %v1033
        %v1043 = vpop.xlane.xlu0 %1042
        %v1044 = vsub.f32 %v1022, %v1037
        %v1045 = vsub.f32 %v1025, %v1039
        %v1046 = vsub.f32 %v1030, %v1041
        %v1047 = vsub.f32 %v1033, %v1043
        %v1048 = vmul.f32 %v1044, 1.442695
        %v1049 = vpow.pop %v1048
        %v1050 = vmul.f32 %v1045, 1.442695
        %v1051 = vpow.pop %v1050
        %v1052 = vmul.f32 %v1046, 1.442695
        %v1053 = vpow.pop %v1052
        %v1054 = vmul.f32 %v1047, 1.442695
        %v1055 = vpow.pop %v1054
        %1056 = vadd.xlane.f32.xlu0 %v1049
        %v1057 = vpop.xlane.xlu0 %1056
        %1058 = vadd.xlane.f32.xlu0 %v1051
        %v1059 = vpop.xlane.xlu0 %1058
        %1060 = vadd.xlane.f32.xlu0 %v1053
        %v1061 = vpop.xlane.xlu0 %1060
        %1062 = vadd.xlane.f32.xlu0 %v1055
        %v1063 = vpop.xlane.xlu0 %1062
        %v1064 = vlog2.pop %v1057
        %v1065 = vmul.f32 %v1064, 0.6931472
        %v1066 = vlog2.pop %v1059
        %v1067 = vmul.f32 %v1066, 0.6931472
        %v1068 = vlog2.pop %v1061
        %v1069 = vmul.f32 %v1068, 0.6931472
        %v1070 = vlog2.pop %v1063
        %v1071 = vmul.f32 %v1070, 0.6931472
        %v1072 = vsub.f32 %v1044, %v1065
        %v1073 = vsub.f32 %v1045, %v1067
        %v1074 = vsub.f32 %v1046, %v1069
        %v1075 = vsub.f32 %v1047, %v1071
        %1076 = vst [vmem:[%s424] sm:$0xff] %v1072
        %1077 = vst [vmem:[%s424 + $0x8] sm:$0xff] %v1073
        %1078 = vst [vmem:[%s424 + $0x10] sm:$0xff] %v1074
        %1079 = vst [vmem:[%s424 + $0x18] sm:$0xff] %v1075
        %s1080 = sand.u32 %s246, 1
        %s1081 = scalar_lea.sflag [#allocation4], %s1080
        %s1082 = sand.u32 %s246, 1
        %s1083 = smul.addr %s1082, 32
        %s1084 = scalar_lea.vmem [#allocation11], %s1083
        // Predicated region
        $region77: #{tpu_custom_call.1} parent=55 // pred_check
          %p1085 = pneg %p256
        $region78: #{tpu_custom_call.1} parent=55 // pred_check_branch
          %1087 = sbr.rel (%p1085) target = $region80
        $region79: #{tpu_custom_call.1} parent=55 // pred_region
          %s1088 = smul.u32 4, %s33
          %s1090 = ssub.s32 512, 512
          %1091 = vsyncadd %s1081, %s1090
          %s1092 = smul.addr %s32, 4
          %s1093 = sadd.s32 %s1088, %s1092
          %s1094 = smul.addr %s1093, 128
          %s1095 = scalar_lea.hbm %s9, %s1094
          %s1096 = sshll.u32 %s1084, 4
          %s1097 = int_to_ptr.vmem [resolvable:$true] %s1096
          %1102 = dma.vmem_to_hbm [thread:$0]  %s1097, 512, %s1095, %s1081, 128, 128, 8
        $region80: #{tpu_custom_call.1} parent=55 // pred_fallthru
          _
      $region56: #{tpu_custom_call.1} parent=5 // pred_fallthru
        _
      %p1103 = scmp.le.s32.totalorder 2, %s23
      // Predicated region
      $region81: #{tpu_custom_call.1} parent=5 // pred_check
        %p1104 = pneg %p1103
      $region82: #{tpu_custom_call.1} parent=5 // pred_check_branch
        %1106 = sbr.rel (%p1104) target = $region84
      $region83: #{tpu_custom_call.1} parent=5 // pred_region
        %s1107 = ssub.s32 %s23, 2
        // Predicated region
        $region85: #{tpu_custom_call.1} parent=83 // pred_check
          %p1108 = pneg %p262
        $region86: #{tpu_custom_call.1} parent=83 // pred_check_branch
          %1110 = sbr.rel (%p1108) target = $region88
        $region87: #{tpu_custom_call.1} parent=83 // pred_region
          %s1111 = sand.u32 %s247, 1
          %s1112 = scalar_lea.sflag [#allocation4], %s1111
          %s1113 = sand.u32 %s247, 1
          %s1114 = smul.addr %s1113, 32
          %s1115 = scalar_lea.vmem [#allocation11], %s1114
          %1116 = dma.done %s1112, 512
        $region88: #{tpu_custom_call.1} parent=83 // pred_fallthru
          _
      $region84: #{tpu_custom_call.1} parent=5 // pred_fallthru
        _
    $region6: #{tpu_custom_call.1} parent=1 // loop_footer
      %s27 = sadd.s32 1, %s23
    $region7: #{tpu_custom_call.1} parent=1 // loop_footer_branch
      %22 = sbr.rel target = $region3
    $region8: #{tpu_custom_call.1} parent=1 // loop_exit
      _
    %1117 = vsyncpa [#allocation3], 1
    %s1118 = scalar_lea.sflag [#allocation3], 1
    %1119 = vsyncpa %s1118, 1
    %1120 = vsyncpa [#allocation6], 1
    %1121 = vsyncpa [#allocation9], 1
    %1122 = vsyncpa [#allocation4], 1
    %s1123 = scalar_lea.sflag [#allocation4], 1
    %1124 = vsyncpa %s1123, 1

</llo_original>
